<compile_context>
chip_gen: v7x
topology: tpu7x:2x2x1
jax: 0.10.0
libtpu: 0.0.40
codegen_flags: <defaults>
</compile_context>

<pallas_src>
import functools

import jax
import jax.numpy as jnp
from jax.experimental import pallas as pl
from jax.experimental.pallas import tpu as pltpu


def lstm_kernel(x_ref, wf_ref, b_ref, hout_ref, h_sc, c_sc):
    """One grid step = T_BLK LSTM timesteps (unrolled). Gate order matches PyTorch: i,f,g,o."""
    blk = pl.program_id(0)
    t_blk = x_ref.shape[0]          # static
    bsz = x_ref.shape[1]
    h_dim = h_sc.shape[1]

    @pl.when(blk == 0)
    def _init():
        h_sc[...] = jnp.zeros_like(h_sc)
        c_sc[...] = jnp.zeros_like(c_sc)

    w_fused = wf_ref[...]                                     # (E+H, 4H) bf16, loaded once
    bias = jnp.broadcast_to(b_ref[...], (bsz, 4 * h_dim))     # hoisted broadcast (B, 4H) f32

    def step(t, carry):
        h, c = carry                                          # f32 (B, H) each
        x_t = x_ref[t]                                        # (B, E) bf16
        xh = jnp.concatenate([x_t, h.astype(x_t.dtype)], axis=1)   # (B, E+H) bf16
        gates = jnp.dot(xh, w_fused,
                        preferred_element_type=jnp.float32) + bias  # (B, 4H) f32

        # EUP transcendentals over the full tile, then static slices (i, f, g, o).
        sig = jax.nn.sigmoid(gates)
        tnh = jnp.tanh(gates)
        i_g = sig[:, 0:h_dim]
        f_g = sig[:, h_dim:2 * h_dim]
        g_g = tnh[:, 2 * h_dim:3 * h_dim]
        o_g = sig[:, 3 * h_dim:4 * h_dim]

        c_new = f_g * c + i_g * g_g
        h_new = o_g * jnp.tanh(c_new)
        return h_new, c_new

    h_fin, c_fin = jax.lax.fori_loop(0, t_blk, step, (h_sc[...], c_sc[...]),
                                     unroll=True)
    h_sc[...] = h_fin
    c_sc[...] = c_fin

    @pl.when(blk == pl.num_programs(0) - 1)
    def _final():
        hout_ref[...] = h_fin.astype(hout_ref.dtype)


@jax.jit
def basic_lstm_forward(tokens, emb_table, w_ih, w_hh, b_ih, b_hh, w_out, b_out):
    """tokens: (B, T) int32. Returns sigmoid(Linear(h_T)) of shape (B, n_classes)."""
    B, T = tokens.shape
    E = emb_table.shape[1]
    H = w_hh.shape[1]

    # Embedding lookup directly in time-major order (T, B, E); padding_idx=0 row is zeroed
    # in the table. Dropout(0.5) in eval mode == identity.
    x_tm = emb_table[tokens.T].astype(jnp.bfloat16)            # (T, B, E) bf16

    # Fused gate weight: [W_ih^T ; W_hh^T] -> (E+H, 4H), bf16 for the MXU.
    w_fused = jnp.concatenate([w_ih.T, w_hh.T], axis=0).astype(jnp.bfloat16)
    bias = (b_ih + b_hh).reshape(1, 4 * H).astype(jnp.float32)  # (1, 4H) f32

    # Whole sequence in one grid step at these sizes (T_BLK = T); the grid generalizes
    # to longer sequences by chunking T.
    T_BLK = T
    assert T % T_BLK == 0
    grid = (T // T_BLK,)

    h_last = pl.pallas_call(
        lstm_kernel,
        out_shape=jax.ShapeDtypeStruct((B, H), jnp.float32),
        grid_spec=pltpu.PrefetchScalarGridSpec(
            num_scalar_prefetch=0,
            grid=grid,
            in_specs=[
                pl.BlockSpec((T_BLK, B, E), lambda b: (b, 0, 0)),    # x block (time-major)
                pl.BlockSpec((E + H, 4 * H), lambda b: (0, 0)),      # fused gate weight
                pl.BlockSpec((1, 4 * H), lambda b: (0, 0)),          # merged bias
            ],
            out_specs=pl.BlockSpec((B, H), lambda b: (0, 0)),        # final hidden state
            scratch_shapes=[
                pltpu.VMEM((B, H), jnp.float32),   # h state (persists across time blocks)
                pltpu.VMEM((B, H), jnp.float32),   # c state
            ],
        ),
        compiler_params=pltpu.CompilerParams(
            dimension_semantics=("arbitrary",)),   # time recurrence is sequential
    )(x_tm, w_fused, bias)

    # Tiny (B,H)@(H,C) projection + sigmoid: plain JAX (avoids a masked 4-lane store
    # and two extra DMA'd operands in the kernel).
    logits = h_last @ w_out.T.astype(jnp.float32) + b_out.astype(jnp.float32)
    return jax.nn.sigmoid(logits)


def _init_params(key, vocab_size, embedding_dim, hidden_dim, n_classes):
    """Deterministic synthetic params matching PyTorch module shapes."""
    ks = jax.random.split(key, 8)
    k = 1.0 / jnp.sqrt(hidden_dim)
    emb = jax.random.normal(ks[0], (vocab_size, embedding_dim), jnp.float32)
    emb = emb.at[0].set(0.0)                                   # padding_idx=0
    w_ih = jax.random.uniform(ks[1], (4 * hidden_dim, embedding_dim), jnp.float32, -k, k)
    w_hh = jax.random.uniform(ks[2], (4 * hidden_dim, hidden_dim), jnp.float32, -k, k)
    b_ih = jax.random.uniform(ks[3], (4 * hidden_dim,), jnp.float32, -k, k)
    b_hh = jax.random.uniform(ks[4], (4 * hidden_dim,), jnp.float32, -k, k)
    w_out = jax.random.uniform(ks[5], (n_classes, hidden_dim), jnp.float32, -k, k)
    b_out = jax.random.uniform(ks[6], (n_classes,), jnp.float32, -k, k)
    return emb, w_ih, w_hh, b_ih, b_hh, w_out, b_out


def _reference_forward(tokens, emb, w_ih, w_hh, b_ih, b_hh, w_out, b_out):
    """Pure-JAX reference following the same numerics path (bf16 matmul operands, f32 acc)."""
    x_tm = emb[tokens.T].astype(jnp.bfloat16)                  # (T, B, E)
    w_fused = jnp.concatenate([w_ih.T, w_hh.T], axis=0).astype(jnp.bfloat16)
    bias = (b_ih + b_hh)[None, :]
    T, B, _ = x_tm.shape
    H = w_hh.shape[1]
    h = jnp.zeros((B, H), jnp.float32)
    c = jnp.zeros((B, H), jnp.float32)
    for t in range(T):
        xh = jnp.concatenate([x_tm[t], h.astype(jnp.bfloat16)], axis=1)
        g = jnp.dot(xh, w_fused, preferred_element_type=jnp.float32) + bias
        i = jax.nn.sigmoid(g[:, 0:H])
        f = jax.nn.sigmoid(g[:, H:2 * H])
        gg = jnp.tanh(g[:, 2 * H:3 * H])
        o = jax.nn.sigmoid(g[:, 3 * H:4 * H])
        c = f * c + i * gg
        h = o * jnp.tanh(c)
    return jax.nn.sigmoid(h @ w_out.T + b_out)


if __name__ == "__main__":
    vocab_size, embedding_dim, hidden_dim, n_classes = 20, 32, 32, 4
    B, T = 2, 8

    key = jax.random.PRNGKey(0)
    kp, kt = jax.random.split(key)
    params = _init_params(kp, vocab_size, embedding_dim, hidden_dim, n_classes)
    tokens = jax.random.randint(kt, (B, T), 0, vocab_size, dtype=jnp.int32)

    out = basic_lstm_forward(tokens, *params)
    out = jax.block_until_ready(out)

    ref = _reference_forward(tokens, *params)
    assert out.shape == (B, n_classes)
    assert jnp.allclose(out, ref, atol=1e-3, rtol=1e-3), (out, ref)
    print("KERNEL_OK")
</pallas_src>

<mosaic_0001>
module attributes {stable_mosaic.version = 11 : i64} {
  func.func @lstm_kernel(%arg0: i32, %arg1: memref<8x2x32xbf16, #tpu.memory_space<vmem>>, %arg2: memref<64x128xbf16, #tpu.memory_space<vmem>>, %arg3: memref<1x128xf32, #tpu.memory_space<vmem>>, %arg4: memref<2x32xf32, #tpu.memory_space<vmem>>, %arg5: memref<2x32xf32, #tpu.memory_space<vmem>>, %arg6: memref<2x32xf32, #tpu.memory_space<vmem>>) attributes {dimension_semantics = [#tpu.dimension_semantics<arbitrary>], iteration_bounds = array<i64: 1>, scalar_prefetch = 0 : i64, scratch_operands = 2 : i64, tpu.core_type = #tpu.core_type<tc>, window_params = [{transform_indices = @transform_0, window_bounds = array<i64: 8, 2, 32>}, {pipeline_mode = #tpu.pipeline_mode<synchronous>, transform_indices = @transform_1, window_bounds = array<i64: 64, 128>}, {pipeline_mode = #tpu.pipeline_mode<synchronous>, transform_indices = @transform_2, window_bounds = array<i64: 1, 128>}, {pipeline_mode = #tpu.pipeline_mode<synchronous>, transform_indices = @transform_3, window_bounds = array<i64: 2, 32>}]} {
    %c0_i32 = arith.constant 0 : i32
    %0 = arith.cmpi eq, %arg0, %c0_i32 : i32
    %1 = arith.extui %0 : i1 to i32
    %c0_i32_0 = arith.constant 0 : i32
    %2 = arith.cmpi ne, %1, %c0_i32_0 : i32
    scf.if %2 {
      %cst_46 = arith.constant 0.000000e+00 : f32
      %190 = vector.broadcast %cst_46 : f32 to vector<2x32xf32>
      %c0_47 = arith.constant 0 : index
      %c0_48 = arith.constant 0 : index
      %191 = vector.load %arg5[%c0_47, %c0_48] : memref<2x32xf32, #tpu.memory_space<vmem>>, vector<2x32xf32>
      tpu.vector_store %arg5[%c0_47, %c0_48], %190 {strides = array<i32>} : memref<2x32xf32, #tpu.memory_space<vmem>>, vector<2x32xf32>,
      %cst_49 = arith.constant 0.000000e+00 : f32
      %192 = vector.broadcast %cst_49 : f32 to vector<2x32xf32>
      %c0_50 = arith.constant 0 : index
      %c0_51 = arith.constant 0 : index
      %193 = vector.load %arg6[%c0_50, %c0_51] : memref<2x32xf32, #tpu.memory_space<vmem>>, vector<2x32xf32>
      tpu.vector_store %arg6[%c0_50, %c0_51], %192 {strides = array<i32>} : memref<2x32xf32, #tpu.memory_space<vmem>>, vector<2x32xf32>,
    } else {
    }
    %c0 = arith.constant 0 : index
    %c0_1 = arith.constant 0 : index
    %3 = vector.load %arg2[%c0, %c0_1] : memref<64x128xbf16, #tpu.memory_space<vmem>>, vector<64x128xbf16>
    %c0_2 = arith.constant 0 : index
    %c0_3 = arith.constant 0 : index
    %4 = vector.load %arg3[%c0_2, %c0_3] : memref<1x128xf32, #tpu.memory_space<vmem>>, vector<1x128xf32>
    %5 = vector.shape_cast %4 : vector<1x128xf32> to vector<1x128xf32>
    %6 = vector.broadcast %5 : vector<1x128xf32> to vector<2x128xf32>
    %c0_4 = arith.constant 0 : index
    %c0_5 = arith.constant 0 : index
    %7 = vector.load %arg5[%c0_4, %c0_5] : memref<2x32xf32, #tpu.memory_space<vmem>>, vector<2x32xf32>
    %c0_6 = arith.constant 0 : index
    %c0_7 = arith.constant 0 : index
    %8 = vector.load %arg6[%c0_6, %c0_7] : memref<2x32xf32, #tpu.memory_space<vmem>>, vector<2x32xf32>
    %c0_i32_8 = arith.constant 0 : i32
    %9 = arith.index_cast %c0_i32_8 : i32 to index
    %c0_9 = arith.constant 0 : index
    %c0_10 = arith.constant 0 : index
    %10 = vector.load %arg1[%9, %c0_9, %c0_10] : memref<8x2x32xbf16, #tpu.memory_space<vmem>>, vector<1x2x32xbf16>
    %11 = vector.shape_cast %10 : vector<1x2x32xbf16> to vector<2x32xbf16>
    %12 = arith.truncf %7 : vector<2x32xf32> to vector<2x32xbf16>
    %13 = tpu.concatenate %11, %12 in 1 : vector<2x32xbf16>, vector<2x32xbf16> -> vector<2x64xbf16>
    %cst = arith.constant dense<0.000000e+00> : vector<2x128xf32>
    %14 = tpu.matmul %13, %3, %cst {dimension_numbers = #tpu.dot_dimension_numbers<[1], [0], [0], [1], [0, 0, 1, 1], [], []>} : vector<2x64xbf16>, vector<64x128xbf16>, vector<2x128xf32> -> vector<2x128xf32>
    %15 = arith.addf %14, %6 : vector<2x128xf32>
    %16 = arith.negf %15 : vector<2x128xf32>
    %17 = math.exp %16 : vector<2x128xf32>
    %cst_11 = arith.constant 1.000000e+00 : f32
    %18 = vector.broadcast %cst_11 : f32 to vector<2x128xf32>
    %19 = arith.addf %18, %17 : vector<2x128xf32>
    %20 = arith.divf %18, %19 : vector<2x128xf32>
    %21 = math.tanh %15 : vector<2x128xf32>
    %22 = vector.extract_strided_slice %20 {offsets = [0, 0], sizes = [2, 32], strides = [1, 1]} : vector<2x128xf32> to vector<2x32xf32>
    %23 = vector.extract_strided_slice %20 {offsets = [0, 32], sizes = [2, 32], strides = [1, 1]} : vector<2x128xf32> to vector<2x32xf32>
    %24 = vector.extract_strided_slice %21 {offsets = [0, 64], sizes = [2, 32], strides = [1, 1]} : vector<2x128xf32> to vector<2x32xf32>
    %25 = vector.extract_strided_slice %20 {offsets = [0, 96], sizes = [2, 32], strides = [1, 1]} : vector<2x128xf32> to vector<2x32xf32>
    %26 = arith.mulf %23, %8 : vector<2x32xf32>
    %27 = arith.mulf %22, %24 : vector<2x32xf32>
    %28 = arith.addf %26, %27 : vector<2x32xf32>
    %29 = math.tanh %28 : vector<2x32xf32>
    %30 = arith.mulf %25, %29 : vector<2x32xf32>
    %c1_i32 = arith.constant 1 : i32
    %31 = arith.index_cast %c1_i32 : i32 to index
    %c0_12 = arith.constant 0 : index
    %c0_13 = arith.constant 0 : index
    %32 = vector.load %arg1[%31, %c0_12, %c0_13] : memref<8x2x32xbf16, #tpu.memory_space<vmem>>, vector<1x2x32xbf16>
    %33 = vector.shape_cast %32 : vector<1x2x32xbf16> to vector<2x32xbf16>
    %34 = arith.truncf %30 : vector<2x32xf32> to vector<2x32xbf16>
    %35 = tpu.concatenate %33, %34 in 1 : vector<2x32xbf16>, vector<2x32xbf16> -> vector<2x64xbf16>
    %cst_14 = arith.constant dense<0.000000e+00> : vector<2x128xf32>
    %36 = tpu.matmul %35, %3, %cst_14 {dimension_numbers = #tpu.dot_dimension_numbers<[1], [0], [0], [1], [0, 0, 1, 1], [], []>} : vector<2x64xbf16>, vector<64x128xbf16>, vector<2x128xf32> -> vector<2x128xf32>
    %37 = arith.addf %36, %6 : vector<2x128xf32>
    %38 = arith.negf %37 : vector<2x128xf32>
    %39 = math.exp %38 : vector<2x128xf32>
    %cst_15 = arith.constant 1.000000e+00 : f32
    %40 = vector.broadcast %cst_15 : f32 to vector<2x128xf32>
    %41 = arith.addf %40, %39 : vector<2x128xf32>
    %42 = arith.divf %40, %41 : vector<2x128xf32>
    %43 = math.tanh %37 : vector<2x128xf32>
    %44 = vector.extract_strided_slice %42 {offsets = [0, 0], sizes = [2, 32], strides = [1, 1]} : vector<2x128xf32> to vector<2x32xf32>
    %45 = vector.extract_strided_slice %42 {offsets = [0, 32], sizes = [2, 32], strides = [1, 1]} : vector<2x128xf32> to vector<2x32xf32>
    %46 = vector.extract_strided_slice %43 {offsets = [0, 64], sizes = [2, 32], strides = [1, 1]} : vector<2x128xf32> to vector<2x32xf32>
    %47 = vector.extract_strided_slice %42 {offsets = [0, 96], sizes = [2, 32], strides = [1, 1]} : vector<2x128xf32> to vector<2x32xf32>
    %48 = arith.mulf %45, %28 : vector<2x32xf32>
    %49 = arith.mulf %44, %46 : vector<2x32xf32>
    %50 = arith.addf %48, %49 : vector<2x32xf32>
    %51 = math.tanh %50 : vector<2x32xf32>
    %52 = arith.mulf %47, %51 : vector<2x32xf32>
    %c2_i32 = arith.constant 2 : i32
    %53 = arith.index_cast %c2_i32 : i32 to index
    %c0_16 = arith.constant 0 : index
    %c0_17 = arith.constant 0 : index
    %54 = vector.load %arg1[%53, %c0_16, %c0_17] : memref<8x2x32xbf16, #tpu.memory_space<vmem>>, vector<1x2x32xbf16>
    %55 = vector.shape_cast %54 : vector<1x2x32xbf16> to vector<2x32xbf16>
    %56 = arith.truncf %52 : vector<2x32xf32> to vector<2x32xbf16>
    %57 = tpu.concatenate %55, %56 in 1 : vector<2x32xbf16>, vector<2x32xbf16> -> vector<2x64xbf16>
    %cst_18 = arith.constant dense<0.000000e+00> : vector<2x128xf32>
    %58 = tpu.matmul %57, %3, %cst_18 {dimension_numbers = #tpu.dot_dimension_numbers<[1], [0], [0], [1], [0, 0, 1, 1], [], []>} : vector<2x64xbf16>, vector<64x128xbf16>, vector<2x128xf32> -> vector<2x128xf32>
    %59 = arith.addf %58, %6 : vector<2x128xf32>
    %60 = arith.negf %59 : vector<2x128xf32>
    %61 = math.exp %60 : vector<2x128xf32>
    %cst_19 = arith.constant 1.000000e+00 : f32
    %62 = vector.broadcast %cst_19 : f32 to vector<2x128xf32>
    %63 = arith.addf %62, %61 : vector<2x128xf32>
    %64 = arith.divf %62, %63 : vector<2x128xf32>
    %65 = math.tanh %59 : vector<2x128xf32>
    %66 = vector.extract_strided_slice %64 {offsets = [0, 0], sizes = [2, 32], strides = [1, 1]} : vector<2x128xf32> to vector<2x32xf32>
    %67 = vector.extract_strided_slice %64 {offsets = [0, 32], sizes = [2, 32], strides = [1, 1]} : vector<2x128xf32> to vector<2x32xf32>
    %68 = vector.extract_strided_slice %65 {offsets = [0, 64], sizes = [2, 32], strides = [1, 1]} : vector<2x128xf32> to vector<2x32xf32>
    %69 = vector.extract_strided_slice %64 {offsets = [0, 96], sizes = [2, 32], strides = [1, 1]} : vector<2x128xf32> to vector<2x32xf32>
    %70 = arith.mulf %67, %50 : vector<2x32xf32>
    %71 = arith.mulf %66, %68 : vector<2x32xf32>
    %72 = arith.addf %70, %71 : vector<2x32xf32>
    %73 = math.tanh %72 : vector<2x32xf32>
    %74 = arith.mulf %69, %73 : vector<2x32xf32>
    %c3_i32 = arith.constant 3 : i32
    %75 = arith.index_cast %c3_i32 : i32 to index
    %c0_20 = arith.constant 0 : index
    %c0_21 = arith.constant 0 : index
    %76 = vector.load %arg1[%75, %c0_20, %c0_21] : memref<8x2x32xbf16, #tpu.memory_space<vmem>>, vector<1x2x32xbf16>
    %77 = vector.shape_cast %76 : vector<1x2x32xbf16> to vector<2x32xbf16>
    %78 = arith.truncf %74 : vector<2x32xf32> to vector<2x32xbf16>
    %79 = tpu.concatenate %77, %78 in 1 : vector<2x32xbf16>, vector<2x32xbf16> -> vector<2x64xbf16>
    %cst_22 = arith.constant dense<0.000000e+00> : vector<2x128xf32>
    %80 = tpu.matmul %79, %3, %cst_22 {dimension_numbers = #tpu.dot_dimension_numbers<[1], [0], [0], [1], [0, 0, 1, 1], [], []>} : vector<2x64xbf16>, vector<64x128xbf16>, vector<2x128xf32> -> vector<2x128xf32>
    %81 = arith.addf %80, %6 : vector<2x128xf32>
    %82 = arith.negf %81 : vector<2x128xf32>
    %83 = math.exp %82 : vector<2x128xf32>
    %cst_23 = arith.constant 1.000000e+00 : f32
    %84 = vector.broadcast %cst_23 : f32 to vector<2x128xf32>
    %85 = arith.addf %84, %83 : vector<2x128xf32>
    %86 = arith.divf %84, %85 : vector<2x128xf32>
    %87 = math.tanh %81 : vector<2x128xf32>
    %88 = vector.extract_strided_slice %86 {offsets = [0, 0], sizes = [2, 32], strides = [1, 1]} : vector<2x128xf32> to vector<2x32xf32>
    %89 = vector.extract_strided_slice %86 {offsets = [0, 32], sizes = [2, 32], strides = [1, 1]} : vector<2x128xf32> to vector<2x32xf32>
    %90 = vector.extract_strided_slice %87 {offsets = [0, 64], sizes = [2, 32], strides = [1, 1]} : vector<2x128xf32> to vector<2x32xf32>
    %91 = vector.extract_strided_slice %86 {offsets = [0, 96], sizes = [2, 32], strides = [1, 1]} : vector<2x128xf32> to vector<2x32xf32>
    %92 = arith.mulf %89, %72 : vector<2x32xf32>
    %93 = arith.mulf %88, %90 : vector<2x32xf32>
    %94 = arith.addf %92, %93 : vector<2x32xf32>
    %95 = math.tanh %94 : vector<2x32xf32>
    %96 = arith.mulf %91, %95 : vector<2x32xf32>
    %c4_i32 = arith.constant 4 : i32
    %97 = arith.index_cast %c4_i32 : i32 to index
    %c0_24 = arith.constant 0 : index
    %c0_25 = arith.constant 0 : index
    %98 = vector.load %arg1[%97, %c0_24, %c0_25] : memref<8x2x32xbf16, #tpu.memory_space<vmem>>, vector<1x2x32xbf16>
    %99 = vector.shape_cast %98 : vector<1x2x32xbf16> to vector<2x32xbf16>
    %100 = arith.truncf %96 : vector<2x32xf32> to vector<2x32xbf16>
    %101 = tpu.concatenate %99, %100 in 1 : vector<2x32xbf16>, vector<2x32xbf16> -> vector<2x64xbf16>
    %cst_26 = arith.constant dense<0.000000e+00> : vector<2x128xf32>
    %102 = tpu.matmul %101, %3, %cst_26 {dimension_numbers = #tpu.dot_dimension_numbers<[1], [0], [0], [1], [0, 0, 1, 1], [], []>} : vector<2x64xbf16>, vector<64x128xbf16>, vector<2x128xf32> -> vector<2x128xf32>
    %103 = arith.addf %102, %6 : vector<2x128xf32>
    %104 = arith.negf %103 : vector<2x128xf32>
    %105 = math.exp %104 : vector<2x128xf32>
    %cst_27 = arith.constant 1.000000e+00 : f32
    %106 = vector.broadcast %cst_27 : f32 to vector<2x128xf32>
    %107 = arith.addf %106, %105 : vector<2x128xf32>
    %108 = arith.divf %106, %107 : vector<2x128xf32>
    %109 = math.tanh %103 : vector<2x128xf32>
    %110 = vector.extract_strided_slice %108 {offsets = [0, 0], sizes = [2, 32], strides = [1, 1]} : vector<2x128xf32> to vector<2x32xf32>
    %111 = vector.extract_strided_slice %108 {offsets = [0, 32], sizes = [2, 32], strides = [1, 1]} : vector<2x128xf32> to vector<2x32xf32>
    %112 = vector.extract_strided_slice %109 {offsets = [0, 64], sizes = [2, 32], strides = [1, 1]} : vector<2x128xf32> to vector<2x32xf32>
    %113 = vector.extract_strided_slice %108 {offsets = [0, 96], sizes = [2, 32], strides = [1, 1]} : vector<2x128xf32> to vector<2x32xf32>
    %114 = arith.mulf %111, %94 : vector<2x32xf32>
    %115 = arith.mulf %110, %112 : vector<2x32xf32>
    %116 = arith.addf %114, %115 : vector<2x32xf32>
    %117 = math.tanh %116 : vector<2x32xf32>
    %118 = arith.mulf %113, %117 : vector<2x32xf32>
    %c5_i32 = arith.constant 5 : i32
    %119 = arith.index_cast %c5_i32 : i32 to index
    %c0_28 = arith.constant 0 : index
    %c0_29 = arith.constant 0 : index
    %120 = vector.load %arg1[%119, %c0_28, %c0_29] : memref<8x2x32xbf16, #tpu.memory_space<vmem>>, vector<1x2x32xbf16>
    %121 = vector.shape_cast %120 : vector<1x2x32xbf16> to vector<2x32xbf16>
    %122 = arith.truncf %118 : vector<2x32xf32> to vector<2x32xbf16>
    %123 = tpu.concatenate %121, %122 in 1 : vector<2x32xbf16>, vector<2x32xbf16> -> vector<2x64xbf16>
    %cst_30 = arith.constant dense<0.000000e+00> : vector<2x128xf32>
    %124 = tpu.matmul %123, %3, %cst_30 {dimension_numbers = #tpu.dot_dimension_numbers<[1], [0], [0], [1], [0, 0, 1, 1], [], []>} : vector<2x64xbf16>, vector<64x128xbf16>, vector<2x128xf32> -> vector<2x128xf32>
    %125 = arith.addf %124, %6 : vector<2x128xf32>
    %126 = arith.negf %125 : vector<2x128xf32>
    %127 = math.exp %126 : vector<2x128xf32>
    %cst_31 = arith.constant 1.000000e+00 : f32
    %128 = vector.broadcast %cst_31 : f32 to vector<2x128xf32>
    %129 = arith.addf %128, %127 : vector<2x128xf32>
    %130 = arith.divf %128, %129 : vector<2x128xf32>
    %131 = math.tanh %125 : vector<2x128xf32>
    %132 = vector.extract_strided_slice %130 {offsets = [0, 0], sizes = [2, 32], strides = [1, 1]} : vector<2x128xf32> to vector<2x32xf32>
    %133 = vector.extract_strided_slice %130 {offsets = [0, 32], sizes = [2, 32], strides = [1, 1]} : vector<2x128xf32> to vector<2x32xf32>
    %134 = vector.extract_strided_slice %131 {offsets = [0, 64], sizes = [2, 32], strides = [1, 1]} : vector<2x128xf32> to vector<2x32xf32>
    %135 = vector.extract_strided_slice %130 {offsets = [0, 96], sizes = [2, 32], strides = [1, 1]} : vector<2x128xf32> to vector<2x32xf32>
    %136 = arith.mulf %133, %116 : vector<2x32xf32>
    %137 = arith.mulf %132, %134 : vector<2x32xf32>
    %138 = arith.addf %136, %137 : vector<2x32xf32>
    %139 = math.tanh %138 : vector<2x32xf32>
    %140 = arith.mulf %135, %139 : vector<2x32xf32>
    %c6_i32 = arith.constant 6 : i32
    %141 = arith.index_cast %c6_i32 : i32 to index
    %c0_32 = arith.constant 0 : index
    %c0_33 = arith.constant 0 : index
    %142 = vector.load %arg1[%141, %c0_32, %c0_33] : memref<8x2x32xbf16, #tpu.memory_space<vmem>>, vector<1x2x32xbf16>
    %143 = vector.shape_cast %142 : vector<1x2x32xbf16> to vector<2x32xbf16>
    %144 = arith.truncf %140 : vector<2x32xf32> to vector<2x32xbf16>
    %145 = tpu.concatenate %143, %144 in 1 : vector<2x32xbf16>, vector<2x32xbf16> -> vector<2x64xbf16>
    %cst_34 = arith.constant dense<0.000000e+00> : vector<2x128xf32>
    %146 = tpu.matmul %145, %3, %cst_34 {dimension_numbers = #tpu.dot_dimension_numbers<[1], [0], [0], [1], [0, 0, 1, 1], [], []>} : vector<2x64xbf16>, vector<64x128xbf16>, vector<2x128xf32> -> vector<2x128xf32>
    %147 = arith.addf %146, %6 : vector<2x128xf32>
    %148 = arith.negf %147 : vector<2x128xf32>
    %149 = math.exp %148 : vector<2x128xf32>
    %cst_35 = arith.constant 1.000000e+00 : f32
    %150 = vector.broadcast %cst_35 : f32 to vector<2x128xf32>
    %151 = arith.addf %150, %149 : vector<2x128xf32>
    %152 = arith.divf %150, %151 : vector<2x128xf32>
    %153 = math.tanh %147 : vector<2x128xf32>
    %154 = vector.extract_strided_slice %152 {offsets = [0, 0], sizes = [2, 32], strides = [1, 1]} : vector<2x128xf32> to vector<2x32xf32>
    %155 = vector.extract_strided_slice %152 {offsets = [0, 32], sizes = [2, 32], strides = [1, 1]} : vector<2x128xf32> to vector<2x32xf32>
    %156 = vector.extract_strided_slice %153 {offsets = [0, 64], sizes = [2, 32], strides = [1, 1]} : vector<2x128xf32> to vector<2x32xf32>
    %157 = vector.extract_strided_slice %152 {offsets = [0, 96], sizes = [2, 32], strides = [1, 1]} : vector<2x128xf32> to vector<2x32xf32>
    %158 = arith.mulf %155, %138 : vector<2x32xf32>
    %159 = arith.mulf %154, %156 : vector<2x32xf32>
    %160 = arith.addf %158, %159 : vector<2x32xf32>
    %161 = math.tanh %160 : vector<2x32xf32>
    %162 = arith.mulf %157, %161 : vector<2x32xf32>
    %c7_i32 = arith.constant 7 : i32
    %163 = arith.index_cast %c7_i32 : i32 to index
    %c0_36 = arith.constant 0 : index
    %c0_37 = arith.constant 0 : index
    %164 = vector.load %arg1[%163, %c0_36, %c0_37] : memref<8x2x32xbf16, #tpu.memory_space<vmem>>, vector<1x2x32xbf16>
    %165 = vector.shape_cast %164 : vector<1x2x32xbf16> to vector<2x32xbf16>
    %166 = arith.truncf %162 : vector<2x32xf32> to vector<2x32xbf16>
    %167 = tpu.concatenate %165, %166 in 1 : vector<2x32xbf16>, vector<2x32xbf16> -> vector<2x64xbf16>
    %cst_38 = arith.constant dense<0.000000e+00> : vector<2x128xf32>
    %168 = tpu.matmul %167, %3, %cst_38 {dimension_numbers = #tpu.dot_dimension_numbers<[1], [0], [0], [1], [0, 0, 1, 1], [], []>} : vector<2x64xbf16>, vector<64x128xbf16>, vector<2x128xf32> -> vector<2x128xf32>
    %169 = arith.addf %168, %6 : vector<2x128xf32>
    %170 = arith.negf %169 : vector<2x128xf32>
    %171 = math.exp %170 : vector<2x128xf32>
    %cst_39 = arith.constant 1.000000e+00 : f32
    %172 = vector.broadcast %cst_39 : f32 to vector<2x128xf32>
    %173 = arith.addf %172, %171 : vector<2x128xf32>
    %174 = arith.divf %172, %173 : vector<2x128xf32>
    %175 = math.tanh %169 : vector<2x128xf32>
    %176 = vector.extract_strided_slice %174 {offsets = [0, 0], sizes = [2, 32], strides = [1, 1]} : vector<2x128xf32> to vector<2x32xf32>
    %177 = vector.extract_strided_slice %174 {offsets = [0, 32], sizes = [2, 32], strides = [1, 1]} : vector<2x128xf32> to vector<2x32xf32>
    %178 = vector.extract_strided_slice %175 {offsets = [0, 64], sizes = [2, 32], strides = [1, 1]} : vector<2x128xf32> to vector<2x32xf32>
    %179 = vector.extract_strided_slice %174 {offsets = [0, 96], sizes = [2, 32], strides = [1, 1]} : vector<2x128xf32> to vector<2x32xf32>
    %180 = arith.mulf %177, %160 : vector<2x32xf32>
    %181 = arith.mulf %176, %178 : vector<2x32xf32>
    %182 = arith.addf %180, %181 : vector<2x32xf32>
    %183 = math.tanh %182 : vector<2x32xf32>
    %184 = arith.mulf %179, %183 : vector<2x32xf32>
    %c8_i32 = arith.constant 8 : i32
    %c0_40 = arith.constant 0 : index
    %c0_41 = arith.constant 0 : index
    %185 = vector.load %arg5[%c0_40, %c0_41] : memref<2x32xf32, #tpu.memory_space<vmem>>, vector<2x32xf32>
    tpu.vector_store %arg5[%c0_40, %c0_41], %184 {strides = array<i32>} : memref<2x32xf32, #tpu.memory_space<vmem>>, vector<2x32xf32>,
    %c0_42 = arith.constant 0 : index
    %c0_43 = arith.constant 0 : index
    %186 = vector.load %arg6[%c0_42, %c0_43] : memref<2x32xf32, #tpu.memory_space<vmem>>, vector<2x32xf32>
    tpu.vector_store %arg6[%c0_42, %c0_43], %182 {strides = array<i32>} : memref<2x32xf32, #tpu.memory_space<vmem>>, vector<2x32xf32>,
    %c0_i32_44 = arith.constant 0 : i32
    %187 = arith.cmpi eq, %arg0, %c0_i32_44 : i32
    %188 = arith.extui %187 : i1 to i32
    %c0_i32_45 = arith.constant 0 : i32
    %189 = arith.cmpi ne, %188, %c0_i32_45 : i32
    scf.if %189 {
      %c0_46 = arith.constant 0 : index
      %c0_47 = arith.constant 0 : index
      %190 = vector.load %arg4[%c0_46, %c0_47] : memref<2x32xf32, #tpu.memory_space<vmem>>, vector<2x32xf32>
      tpu.vector_store %arg4[%c0_46, %c0_47], %184 {strides = array<i32>} : memref<2x32xf32, #tpu.memory_space<vmem>>, vector<2x32xf32>,
    } else {
    }
    return
  }
  func.func @transform_0(%arg0: i32) -> (i32, i32, i32) {
    %c0_i32 = arith.constant 0 : i32
    %c0_i32_0 = arith.constant 0 : i32
    %c0_i32_1 = arith.constant 0 : i32
    return %arg0, %c0_i32, %c0_i32_0 : i32, i32, i32
  }
  func.func @transform_1(%arg0: i32) -> (i32, i32) {
    %c0_i32 = arith.constant 0 : i32
    %c0_i32_0 = arith.constant 0 : i32
    %c0_i32_1 = arith.constant 0 : i32
    return %c0_i32, %c0_i32_0 : i32, i32
  }
  func.func @transform_2(%arg0: i32) -> (i32, i32) {
    %c0_i32 = arith.constant 0 : i32
    %c0_i32_0 = arith.constant 0 : i32
    %c0_i32_1 = arith.constant 0 : i32
    return %c0_i32, %c0_i32_0 : i32, i32
  }
  func.func @transform_3(%arg0: i32) -> (i32, i32) {
    %c0_i32 = arith.constant 0 : i32
    %c0_i32_0 = arith.constant 0 : i32
    %c0_i32_1 = arith.constant 0 : i32
    return %c0_i32, %c0_i32_0 : i32, i32
  }
}

</mosaic_0001>

<llo_original>
// kernel: basic_lstm_forward.1
$region0: #{basic_lstm_forward.1}
  #allocation0 [shape = 'u32[]', space=smem, size = 0x4, offset = 0x4, fixed_abs, tag = 'smem constant byte address 0x4 - core index']
  #allocation1 [shape = 'u32[144,128]{1,0:T(1,128)}', space=vmem, size = 0x12000, scoped, tag = 'internal scratch']
  #allocation2 [shape = 'f32[2,32]{1,0:T(2,128)}', space=vmem, size = 0x400, scoped, tag = 'scratch operand']
  #allocation3 [shape = 'f32[2,32]{1,0:T(2,128)}', space=vmem, size = 0x400, scoped, tag = 'scratch operand']
  %s0 = inlined_call_operand.vmem [shape: bf16[8,2,32], index: 0, kind: input, shape index: {}]
  %s1 = inlined_call_operand.vmem [shape: bf16[64,128], index: 1, kind: input, shape index: {}]
  %s2 = inlined_call_operand.vmem [shape: f32[1,128], index: 2, kind: input, shape index: {}]
  %s3 = inlined_call_operand.vmem [shape: f32[2,32], index: 3, kind: output, shape index: {}]
  %s4 = sld [smem:[#allocation0]]
  $region30: #{basic_lstm_forward.1} parent=0
    _
  %s6 = ssub.s32 1, %s4
  %s7 = scalar_select 0, %s6, %s4
  // Predicated region
  $region2: #{basic_lstm_forward.1} parent=0 // pred_check
    _
  $region3: #{basic_lstm_forward.1} parent=0 // pred_check_branch
    %9 = sbr.rel (0) target = $region5
  $region4: #{basic_lstm_forward.1} parent=0 // pred_region
    _
  $region5: #{basic_lstm_forward.1} parent=0 // pred_fallthru
    _
  // Predicated region
  $region6: #{basic_lstm_forward.1} parent=0 // pred_check
    _
  $region7: #{basic_lstm_forward.1} parent=0 // pred_check_branch
    %11 = sbr.rel (0) target = $region9
  $region8: #{basic_lstm_forward.1} parent=0 // pred_region
    _
  $region9: #{basic_lstm_forward.1} parent=0 // pred_fallthru
    _
  // Predicated region
  $region10: #{basic_lstm_forward.1} parent=0 // pred_check
    _
  $region11: #{basic_lstm_forward.1} parent=0 // pred_check_branch
    %13 = sbr.rel (0) target = $region13
  $region12: #{basic_lstm_forward.1} parent=0 // pred_region
    _
  $region13: #{basic_lstm_forward.1} parent=0 // pred_fallthru
    _
  %p15 = scmp.eq.s32.totalorder 0, 0
  // Predicated region
  $region14: #{basic_lstm_forward.1} parent=0 // pred_check
    %p16 = pneg %p15
  $region15: #{basic_lstm_forward.1} parent=0 // pred_check_branch
    %18 = sbr.rel (%p16) target = $region17
  $region16: #{basic_lstm_forward.1} parent=0 // pred_region
    %vm19 = vcmask 254976
    %20 = vst.msk [vmem:[#allocation2] sm:$0x3] %vm19, 0.0
    %21 = vst.msk [vmem:[#allocation3] sm:$0x3] %vm19, 0.0
  $region17: #{basic_lstm_forward.1} parent=0 // pred_fallthru
    _
  %v22 = vld [vmem:[%s1] sm:$0xf]
  %v23 = vld [vmem:[%s1 + $0x4] sm:$0xf]
  %v24 = vld [vmem:[%s1 + $0x8] sm:$0xf]
  %v25 = vld [vmem:[%s1 + $0xc] sm:$0xf]
  %v26 = vld [vmem:[%s1 + $0x10] sm:$0xf]
  %v27 = vld [vmem:[%s1 + $0x14] sm:$0xf]
  %v28 = vld [vmem:[%s1 + $0x18] sm:$0xf]
  %v29 = vld [vmem:[%s1 + $0x1c] sm:$0xf]
  %v30 = vld [vmem:[%s2] sm:$0x1]
  %v32 = vlaneseq
  %v33 = vshrl.u32 %v32, 7
  %v34 = vsub.s32 0, %v33
  %v35 = vrot.slane %v30, %v34
  %v37 = vld [vmem:[#allocation2] sm:$0x3]
  %v38 = vld [vmem:[#allocation3] sm:$0x3]
  %v39 = vld [vmem:[%s0] sm:$0x1]
  %v40 = vpack.c.bf16 %v37, %v37
  %42 = vrot.lane.b32.xlu0 %v40, 32
  %v43 = vpop.permute.xlu0 %42
  %vm44 = vcmask 261120
  %v47 = vsel %vm44, %v39, %v43
  %v56 = vunpack.c.l.b16 %v22
  %v57 = vunpack.c.l.b16 %v23
  %v58 = vunpack.c.l.b16 %v24
  %v59 = vunpack.c.l.b16 %v25
  %v60 = vunpack.c.l.b16 %v26
  %v61 = vunpack.c.l.b16 %v27
  %v62 = vunpack.c.l.b16 %v28
  %v63 = vunpack.c.l.b16 %v29
  %v64 = vpack.c.b16 %v57, %v56
  %v65 = vpack.c.b16 %v59, %v58
  %v66 = vpack.c.b16 %v61, %v60
  %v67 = vpack.c.b16 %v63, %v62
  %vm72 = vcmask 523264
  %v73 = vsel %vm72, %v47, 0
  %75 = vmatprep.subr.bf16.mxu0 0
  %76 = vmatpush1.bf16.msra.mxu0 %v64
  %77 = vmatprep.subr.bf16.mxu0 0
  %78 = vmatpush1.bf16.msra.mxu0 %v65
  %79 = vmatprep.subr.bf16.mxu0 0
  %80 = vmatpush1.bf16.msra.mxu0 %v66
  %81 = vmatprep.subr.bf16.mxu0 0
  %82 = vmatpush1.bf16.msra.mxu0 %v67
  %83 = vmatprep.subr.bf16.mxu0 0
  %84 = vmatpush1.bf16.msra.mxu0 0
  %85 = vmatprep.subr.bf16.mxu0 0
  %86 = vmatpush1.bf16.msra.mxu0 0
  %87 = vmatprep.subr.bf16.mxu0 0
  %88 = vmatpush1.bf16.msra.mxu0 0
  %89 = vmatprep.subr.bf16.mxu0 0
  %90 = vmatpush1.bf16.msra.mxu0 0
  %91 = vmatprep.subr.bf16.mxu0 0
  %92 = vmatpush1.bf16.msra.mxu0 0
  %93 = vmatprep.subr.bf16.mxu0 0
  %94 = vmatpush1.bf16.msra.mxu0 0
  %95 = vmatprep.subr.bf16.mxu0 0
  %96 = vmatpush1.bf16.msra.mxu0 0
  %97 = vmatprep.subr.bf16.mxu0 0
  %98 = vmatpush1.bf16.msra.mxu0 0
  %99 = vmatprep.subr.bf16.mxu0 0
  %100 = vmatpush1.bf16.msra.mxu0 0
  %101 = vmatprep.subr.bf16.mxu0 0
  %102 = vmatpush1.bf16.msra.mxu0 0
  %103 = vmatprep.subr.bf16.mxu0 0
  %104 = vmatpush1.bf16.msra.mxu0 0
  %105 = vmatprep.subr.bf16.mxu0 0
  %106 = vmatpush1.bf16.msra.mxu0 0
  %107 = vmatprep.mubr.bf16.mxu0 0
  %108 = vmatmul.mubr.bf16.gmra.mrb[0].mxu0 %v73
  %v109 = vpop.f32.mrb[0].mxu0
  %v110 = vadd.f32 %v35, %v109
  %v111 = vpop.f32.mrb[0].mxu0
  %v112 = vpop.f32.mrb[0].mxu0
  %v113 = vpop.f32.mrb[0].mxu0
  %114 = vdwg.mxu0
  %v115 = vxor.u32 %v110, 2147483648
  %v116 = vmul.f32 %v115, 1.442695
  %v117 = vpow.pop %v116
  %v118 = vadd.f32 %v117, 1.0
  %v119 = vrcp.pop %v118
  %v120 = vmul.f32 1.0, %v119
  %v121 = vtanh.pop %v110
  %123 = vrot.lane.b32.xlu0 %v38, 32
  %v124 = vpop.permute.xlu0 %123
  %v126 = vmul.f32 %v120, %v124
  %128 = vrot.lane.b32.xlu0 %v121, 64
  %v129 = vpop.permute.xlu0 %128
  %v131 = vmul.f32 %v120, %v129
  %133 = vrot.lane.b32.xlu0 %v131, 32
  %v134 = vpop.permute.xlu0 %133
  %v136 = vadd.f32 %v126, %v134
  %v137 = vtanh.pop %v136
  %139 = vrot.lane.b32.xlu0 %v137, 64
  %v140 = vpop.permute.xlu0 %139
  %v142 = vmul.f32 %v120, %v140
  %s143 = scalar_lea.vmem %s0, 1
  %v144 = vld [vmem:[%s143] sm:$0x1]
  %v145 = vpack.c.bf16 %v142, %v142
  %147 = vrot.lane.b32.xlu0 %v145, 64
  %v148 = vpop.permute.xlu0 %147
  %v151 = vsel %vm44, %v144, %v148
  %v152 = vsel %vm72, %v151, 0
  %154 = vmatprep.subr.bf16.mxu0 0
  %155 = vmatpush1.bf16.msra.mxu0 %v64
  %156 = vmatprep.subr.bf16.mxu0 0
  %157 = vmatpush1.bf16.msra.mxu0 %v65
  %158 = vmatprep.subr.bf16.mxu0 0
  %159 = vmatpush1.bf16.msra.mxu0 %v66
  %160 = vmatprep.subr.bf16.mxu0 0
  %161 = vmatpush1.bf16.msra.mxu0 %v67
  %162 = vmatprep.subr.bf16.mxu0 0
  %163 = vmatpush1.bf16.msra.mxu0 0
  %164 = vmatprep.subr.bf16.mxu0 0
  %165 = vmatpush1.bf16.msra.mxu0 0
  %166 = vmatprep.subr.bf16.mxu0 0
  %167 = vmatpush1.bf16.msra.mxu0 0
  %168 = vmatprep.subr.bf16.mxu0 0
  %169 = vmatpush1.bf16.msra.mxu0 0
  %170 = vmatprep.subr.bf16.mxu0 0
  %171 = vmatpush1.bf16.msra.mxu0 0
  %172 = vmatprep.subr.bf16.mxu0 0
  %173 = vmatpush1.bf16.msra.mxu0 0
  %174 = vmatprep.subr.bf16.mxu0 0
  %175 = vmatpush1.bf16.msra.mxu0 0
  %176 = vmatprep.subr.bf16.mxu0 0
  %177 = vmatpush1.bf16.msra.mxu0 0
  %178 = vmatprep.subr.bf16.mxu0 0
  %179 = vmatpush1.bf16.msra.mxu0 0
  %180 = vmatprep.subr.bf16.mxu0 0
  %181 = vmatpush1.bf16.msra.mxu0 0
  %182 = vmatprep.subr.bf16.mxu0 0
  %183 = vmatpush1.bf16.msra.mxu0 0
  %184 = vmatprep.subr.bf16.mxu0 0
  %185 = vmatpush1.bf16.msra.mxu0 0
  %186 = vmatprep.mubr.bf16.mxu0 0
  %187 = vmatmul.mubr.bf16.gmra.mrb[0].mxu0 %v152
  %v188 = vpop.f32.mrb[0].mxu0
  %v189 = vadd.f32 %v35, %v188
  %v190 = vpop.f32.mrb[0].mxu0
  %v191 = vpop.f32.mrb[0].mxu0
  %v192 = vpop.f32.mrb[0].mxu0
  %193 = vdwg.mxu0
  %v194 = vxor.u32 %v189, 2147483648
  %v195 = vmul.f32 %v194, 1.442695
  %v196 = vpow.pop %v195
  %v197 = vadd.f32 %v196, 1.0
  %v198 = vrcp.pop %v197
  %v199 = vmul.f32 1.0, %v198
  %v200 = vtanh.pop %v189
  %v201 = vmul.f32 %v199, %v136
  %203 = vrot.lane.b32.xlu0 %v200, 64
  %v204 = vpop.permute.xlu0 %203
  %v206 = vmul.f32 %v199, %v204
  %208 = vrot.lane.b32.xlu0 %v206, 32
  %v209 = vpop.permute.xlu0 %208
  %v211 = vadd.f32 %v201, %v209
  %v212 = vtanh.pop %v211
  %214 = vrot.lane.b32.xlu0 %v212, 64
  %v215 = vpop.permute.xlu0 %214
  %v217 = vmul.f32 %v199, %v215
  %s218 = scalar_lea.vmem %s0, 2
  %v219 = vld [vmem:[%s218] sm:$0x1]
  %v220 = vpack.c.bf16 %v217, %v217
  %222 = vrot.lane.b32.xlu0 %v220, 64
  %v223 = vpop.permute.xlu0 %222
  %v226 = vsel %vm44, %v219, %v223
  %v227 = vsel %vm72, %v226, 0
  %229 = vmatprep.subr.bf16.mxu0 0
  %230 = vmatpush1.bf16.msra.mxu0 %v64
  %231 = vmatprep.subr.bf16.mxu0 0
  %232 = vmatpush1.bf16.msra.mxu0 %v65
  %233 = vmatprep.subr.bf16.mxu0 0
  %234 = vmatpush1.bf16.msra.mxu0 %v66
  %235 = vmatprep.subr.bf16.mxu0 0
  %236 = vmatpush1.bf16.msra.mxu0 %v67
  %237 = vmatprep.subr.bf16.mxu0 0
  %238 = vmatpush1.bf16.msra.mxu0 0
  %239 = vmatprep.subr.bf16.mxu0 0
  %240 = vmatpush1.bf16.msra.mxu0 0
  %241 = vmatprep.subr.bf16.mxu0 0
  %242 = vmatpush1.bf16.msra.mxu0 0
  %243 = vmatprep.subr.bf16.mxu0 0
  %244 = vmatpush1.bf16.msra.mxu0 0
  %245 = vmatprep.subr.bf16.mxu0 0
  %246 = vmatpush1.bf16.msra.mxu0 0
  %247 = vmatprep.subr.bf16.mxu0 0
  %248 = vmatpush1.bf16.msra.mxu0 0
  %249 = vmatprep.subr.bf16.mxu0 0
  %250 = vmatpush1.bf16.msra.mxu0 0
  %251 = vmatprep.subr.bf16.mxu0 0
  %252 = vmatpush1.bf16.msra.mxu0 0
  %253 = vmatprep.subr.bf16.mxu0 0
  %254 = vmatpush1.bf16.msra.mxu0 0
  %255 = vmatprep.subr.bf16.mxu0 0
  %256 = vmatpush1.bf16.msra.mxu0 0
  %257 = vmatprep.subr.bf16.mxu0 0
  %258 = vmatpush1.bf16.msra.mxu0 0
  %259 = vmatprep.subr.bf16.mxu0 0
  %260 = vmatpush1.bf16.msra.mxu0 0
  %261 = vmatprep.mubr.bf16.mxu0 0
  %262 = vmatmul.mubr.bf16.gmra.mrb[0].mxu0 %v227
  %v263 = vpop.f32.mrb[0].mxu0
  %v264 = vadd.f32 %v35, %v263
  %v265 = vpop.f32.mrb[0].mxu0
  %v266 = vpop.f32.mrb[0].mxu0
  %v267 = vpop.f32.mrb[0].mxu0
  %268 = vdwg.mxu0
  %v269 = vxor.u32 %v264, 2147483648
  %v270 = vmul.f32 %v269, 1.442695
  %v271 = vpow.pop %v270
  %v272 = vadd.f32 %v271, 1.0
  %v273 = vrcp.pop %v272
  %v274 = vmul.f32 1.0, %v273
  %v275 = vtanh.pop %v264
  %v276 = vmul.f32 %v274, %v211
  %278 = vrot.lane.b32.xlu0 %v275, 64
  %v279 = vpop.permute.xlu0 %278
  %v281 = vmul.f32 %v274, %v279
  %283 = vrot.lane.b32.xlu0 %v281, 32
  %v284 = vpop.permute.xlu0 %283
  %v286 = vadd.f32 %v276, %v284
  %v287 = vtanh.pop %v286
  %289 = vrot.lane.b32.xlu0 %v287, 64
  %v290 = vpop.permute.xlu0 %289
  %v292 = vmul.f32 %v274, %v290
  %s293 = scalar_lea.vmem %s0, 3
  %v294 = vld [vmem:[%s293] sm:$0x1]
  %v295 = vpack.c.bf16 %v292, %v292
  %297 = vrot.lane.b32.xlu0 %v295, 64
  %v298 = vpop.permute.xlu0 %297
  %v301 = vsel %vm44, %v294, %v298
  %v302 = vsel %vm72, %v301, 0
  %304 = vmatprep.subr.bf16.mxu0 0
  %305 = vmatpush1.bf16.msra.mxu0 %v64
  %306 = vmatprep.subr.bf16.mxu0 0
  %307 = vmatpush1.bf16.msra.mxu0 %v65
  %308 = vmatprep.subr.bf16.mxu0 0
  %309 = vmatpush1.bf16.msra.mxu0 %v66
  %310 = vmatprep.subr.bf16.mxu0 0
  %311 = vmatpush1.bf16.msra.mxu0 %v67
  %312 = vmatprep.subr.bf16.mxu0 0
  %313 = vmatpush1.bf16.msra.mxu0 0
  %314 = vmatprep.subr.bf16.mxu0 0
  %315 = vmatpush1.bf16.msra.mxu0 0
  %316 = vmatprep.subr.bf16.mxu0 0
  %317 = vmatpush1.bf16.msra.mxu0 0
  %318 = vmatprep.subr.bf16.mxu0 0
  %319 = vmatpush1.bf16.msra.mxu0 0
  %320 = vmatprep.subr.bf16.mxu0 0
  %321 = vmatpush1.bf16.msra.mxu0 0
  %322 = vmatprep.subr.bf16.mxu0 0
  %323 = vmatpush1.bf16.msra.mxu0 0
  %324 = vmatprep.subr.bf16.mxu0 0
  %325 = vmatpush1.bf16.msra.mxu0 0
  %326 = vmatprep.subr.bf16.mxu0 0
  %327 = vmatpush1.bf16.msra.mxu0 0
  %328 = vmatprep.subr.bf16.mxu0 0
  %329 = vmatpush1.bf16.msra.mxu0 0
  %330 = vmatprep.subr.bf16.mxu0 0
  %331 = vmatpush1.bf16.msra.mxu0 0
  %332 = vmatprep.subr.bf16.mxu0 0
  %333 = vmatpush1.bf16.msra.mxu0 0
  %334 = vmatprep.subr.bf16.mxu0 0
  %335 = vmatpush1.bf16.msra.mxu0 0
  %336 = vmatprep.mubr.bf16.mxu0 0
  %337 = vmatmul.mubr.bf16.gmra.mrb[0].mxu0 %v302
  %v338 = vpop.f32.mrb[0].mxu0
  %v339 = vadd.f32 %v35, %v338
  %v340 = vpop.f32.mrb[0].mxu0
  %v341 = vpop.f32.mrb[0].mxu0
  %v342 = vpop.f32.mrb[0].mxu0
  %343 = vdwg.mxu0
  %v344 = vxor.u32 %v339, 2147483648
  %v345 = vmul.f32 %v344, 1.442695
  %v346 = vpow.pop %v345
  %v347 = vadd.f32 %v346, 1.0
  %v348 = vrcp.pop %v347
  %v349 = vmul.f32 1.0, %v348
  %v350 = vtanh.pop %v339
  %v351 = vmul.f32 %v349, %v286
  %353 = vrot.lane.b32.xlu0 %v350, 64
  %v354 = vpop.permute.xlu0 %353
  %v356 = vmul.f32 %v349, %v354
  %358 = vrot.lane.b32.xlu0 %v356, 32
  %v359 = vpop.permute.xlu0 %358
  %v361 = vadd.f32 %v351, %v359
  %v362 = vtanh.pop %v361
  %364 = vrot.lane.b32.xlu0 %v362, 64
  %v365 = vpop.permute.xlu0 %364
  %v367 = vmul.f32 %v349, %v365
  %s368 = scalar_lea.vmem %s0, 4
  %v369 = vld [vmem:[%s368] sm:$0x1]
  %v370 = vpack.c.bf16 %v367, %v367
  %372 = vrot.lane.b32.xlu0 %v370, 64
  %v373 = vpop.permute.xlu0 %372
  %v376 = vsel %vm44, %v369, %v373
  %v377 = vsel %vm72, %v376, 0
  %379 = vmatprep.subr.bf16.mxu0 0
  %380 = vmatpush1.bf16.msra.mxu0 %v64
  %381 = vmatprep.subr.bf16.mxu0 0
  %382 = vmatpush1.bf16.msra.mxu0 %v65
  %383 = vmatprep.subr.bf16.mxu0 0
  %384 = vmatpush1.bf16.msra.mxu0 %v66
  %385 = vmatprep.subr.bf16.mxu0 0
  %386 = vmatpush1.bf16.msra.mxu0 %v67
  %387 = vmatprep.subr.bf16.mxu0 0
  %388 = vmatpush1.bf16.msra.mxu0 0
  %389 = vmatprep.subr.bf16.mxu0 0
  %390 = vmatpush1.bf16.msra.mxu0 0
  %391 = vmatprep.subr.bf16.mxu0 0
  %392 = vmatpush1.bf16.msra.mxu0 0
  %393 = vmatprep.subr.bf16.mxu0 0
  %394 = vmatpush1.bf16.msra.mxu0 0
  %395 = vmatprep.subr.bf16.mxu0 0
  %396 = vmatpush1.bf16.msra.mxu0 0
  %397 = vmatprep.subr.bf16.mxu0 0
  %398 = vmatpush1.bf16.msra.mxu0 0
  %399 = vmatprep.subr.bf16.mxu0 0
  %400 = vmatpush1.bf16.msra.mxu0 0
  %401 = vmatprep.subr.bf16.mxu0 0
  %402 = vmatpush1.bf16.msra.mxu0 0
  %403 = vmatprep.subr.bf16.mxu0 0
  %404 = vmatpush1.bf16.msra.mxu0 0
  %405 = vmatprep.subr.bf16.mxu0 0
  %406 = vmatpush1.bf16.msra.mxu0 0
  %407 = vmatprep.subr.bf16.mxu0 0
  %408 = vmatpush1.bf16.msra.mxu0 0
  %409 = vmatprep.subr.bf16.mxu0 0
  %410 = vmatpush1.bf16.msra.mxu0 0
  %411 = vmatprep.mubr.bf16.mxu0 0
  %412 = vmatmul.mubr.bf16.gmra.mrb[0].mxu0 %v377
  %v413 = vpop.f32.mrb[0].mxu0
  %v414 = vadd.f32 %v35, %v413
  %v415 = vpop.f32.mrb[0].mxu0
  %v416 = vpop.f32.mrb[0].mxu0
  %v417 = vpop.f32.mrb[0].mxu0
  %418 = vdwg.mxu0
  %v419 = vxor.u32 %v414, 2147483648
  %v420 = vmul.f32 %v419, 1.442695
  %v421 = vpow.pop %v420
  %v422 = vadd.f32 %v421, 1.0
  %v423 = vrcp.pop %v422
  %v424 = vmul.f32 1.0, %v423
  %v425 = vtanh.pop %v414
  %v426 = vmul.f32 %v424, %v361
  %428 = vrot.lane.b32.xlu0 %v425, 64
  %v429 = vpop.permute.xlu0 %428
  %v431 = vmul.f32 %v424, %v429
  %433 = vrot.lane.b32.xlu0 %v431, 32
  %v434 = vpop.permute.xlu0 %433
  %v436 = vadd.f32 %v426, %v434
  %v437 = vtanh.pop %v436
  %439 = vrot.lane.b32.xlu0 %v437, 64
  %v440 = vpop.permute.xlu0 %439
  %v442 = vmul.f32 %v424, %v440
  %s443 = scalar_lea.vmem %s0, 5
  %v444 = vld [vmem:[%s443] sm:$0x1]
  %v445 = vpack.c.bf16 %v442, %v442
  %447 = vrot.lane.b32.xlu0 %v445, 64
  %v448 = vpop.permute.xlu0 %447
  %v451 = vsel %vm44, %v444, %v448
  %v452 = vsel %vm72, %v451, 0
  %454 = vmatprep.subr.bf16.mxu0 0
  %455 = vmatpush1.bf16.msra.mxu0 %v64
  %456 = vmatprep.subr.bf16.mxu0 0
  %457 = vmatpush1.bf16.msra.mxu0 %v65
  %458 = vmatprep.subr.bf16.mxu0 0
  %459 = vmatpush1.bf16.msra.mxu0 %v66
  %460 = vmatprep.subr.bf16.mxu0 0
  %461 = vmatpush1.bf16.msra.mxu0 %v67
  %462 = vmatprep.subr.bf16.mxu0 0
  %463 = vmatpush1.bf16.msra.mxu0 0
  %464 = vmatprep.subr.bf16.mxu0 0
  %465 = vmatpush1.bf16.msra.mxu0 0
  %466 = vmatprep.subr.bf16.mxu0 0
  %467 = vmatpush1.bf16.msra.mxu0 0
  %468 = vmatprep.subr.bf16.mxu0 0
  %469 = vmatpush1.bf16.msra.mxu0 0
  %470 = vmatprep.subr.bf16.mxu0 0
  %471 = vmatpush1.bf16.msra.mxu0 0
  %472 = vmatprep.subr.bf16.mxu0 0
  %473 = vmatpush1.bf16.msra.mxu0 0
  %474 = vmatprep.subr.bf16.mxu0 0
  %475 = vmatpush1.bf16.msra.mxu0 0
  %476 = vmatprep.subr.bf16.mxu0 0
  %477 = vmatpush1.bf16.msra.mxu0 0
  %478 = vmatprep.subr.bf16.mxu0 0
  %479 = vmatpush1.bf16.msra.mxu0 0
  %480 = vmatprep.subr.bf16.mxu0 0
  %481 = vmatpush1.bf16.msra.mxu0 0
  %482 = vmatprep.subr.bf16.mxu0 0
  %483 = vmatpush1.bf16.msra.mxu0 0
  %484 = vmatprep.subr.bf16.mxu0 0
  %485 = vmatpush1.bf16.msra.mxu0 0
  %486 = vmatprep.mubr.bf16.mxu0 0
  %487 = vmatmul.mubr.bf16.gmra.mrb[0].mxu0 %v452
  %v488 = vpop.f32.mrb[0].mxu0
  %v489 = vadd.f32 %v35, %v488
  %v490 = vpop.f32.mrb[0].mxu0
  %v491 = vpop.f32.mrb[0].mxu0
  %v492 = vpop.f32.mrb[0].mxu0
  %493 = vdwg.mxu0
  %v494 = vxor.u32 %v489, 2147483648
  %v495 = vmul.f32 %v494, 1.442695
  %v496 = vpow.pop %v495
  %v497 = vadd.f32 %v496, 1.0
  %v498 = vrcp.pop %v497
  %v499 = vmul.f32 1.0, %v498
  %v500 = vtanh.pop %v489
  %v501 = vmul.f32 %v499, %v436
  %503 = vrot.lane.b32.xlu0 %v500, 64
  %v504 = vpop.permute.xlu0 %503
  %v506 = vmul.f32 %v499, %v504
  %508 = vrot.lane.b32.xlu0 %v506, 32
  %v509 = vpop.permute.xlu0 %508
  %v511 = vadd.f32 %v501, %v509
  %v512 = vtanh.pop %v511
  %514 = vrot.lane.b32.xlu0 %v512, 64
  %v515 = vpop.permute.xlu0 %514
  %v517 = vmul.f32 %v499, %v515
  %s518 = scalar_lea.vmem %s0, 6
  %v519 = vld [vmem:[%s518] sm:$0x1]
  %v520 = vpack.c.bf16 %v517, %v517
  %522 = vrot.lane.b32.xlu0 %v520, 64
  %v523 = vpop.permute.xlu0 %522
  %v526 = vsel %vm44, %v519, %v523
  %v527 = vsel %vm72, %v526, 0
  %529 = vmatprep.subr.bf16.mxu0 0
  %530 = vmatpush1.bf16.msra.mxu0 %v64
  %531 = vmatprep.subr.bf16.mxu0 0
  %532 = vmatpush1.bf16.msra.mxu0 %v65
  %533 = vmatprep.subr.bf16.mxu0 0
  %534 = vmatpush1.bf16.msra.mxu0 %v66
  %535 = vmatprep.subr.bf16.mxu0 0
  %536 = vmatpush1.bf16.msra.mxu0 %v67
  %537 = vmatprep.subr.bf16.mxu0 0
  %538 = vmatpush1.bf16.msra.mxu0 0
  %539 = vmatprep.subr.bf16.mxu0 0
  %540 = vmatpush1.bf16.msra.mxu0 0
  %541 = vmatprep.subr.bf16.mxu0 0
  %542 = vmatpush1.bf16.msra.mxu0 0
  %543 = vmatprep.subr.bf16.mxu0 0
  %544 = vmatpush1.bf16.msra.mxu0 0
  %545 = vmatprep.subr.bf16.mxu0 0
  %546 = vmatpush1.bf16.msra.mxu0 0
  %547 = vmatprep.subr.bf16.mxu0 0
  %548 = vmatpush1.bf16.msra.mxu0 0
  %549 = vmatprep.subr.bf16.mxu0 0
  %550 = vmatpush1.bf16.msra.mxu0 0
  %551 = vmatprep.subr.bf16.mxu0 0
  %552 = vmatpush1.bf16.msra.mxu0 0
  %553 = vmatprep.subr.bf16.mxu0 0
  %554 = vmatpush1.bf16.msra.mxu0 0
  %555 = vmatprep.subr.bf16.mxu0 0
  %556 = vmatpush1.bf16.msra.mxu0 0
  %557 = vmatprep.subr.bf16.mxu0 0
  %558 = vmatpush1.bf16.msra.mxu0 0
  %559 = vmatprep.subr.bf16.mxu0 0
  %560 = vmatpush1.bf16.msra.mxu0 0
  %561 = vmatprep.mubr.bf16.mxu0 0
  %562 = vmatmul.mubr.bf16.gmra.mrb[0].mxu0 %v527
  %v563 = vpop.f32.mrb[0].mxu0
  %v564 = vadd.f32 %v35, %v563
  %v565 = vpop.f32.mrb[0].mxu0
  %v566 = vpop.f32.mrb[0].mxu0
  %v567 = vpop.f32.mrb[0].mxu0
  %568 = vdwg.mxu0
  %v569 = vxor.u32 %v564, 2147483648
  %v570 = vmul.f32 %v569, 1.442695
  %v571 = vpow.pop %v570
  %v572 = vadd.f32 %v571, 1.0
  %v573 = vrcp.pop %v572
  %v574 = vmul.f32 1.0, %v573
  %v575 = vtanh.pop %v564
  %v576 = vmul.f32 %v574, %v511
  %578 = vrot.lane.b32.xlu0 %v575, 64
  %v579 = vpop.permute.xlu0 %578
  %v581 = vmul.f32 %v574, %v579
  %583 = vrot.lane.b32.xlu0 %v581, 32
  %v584 = vpop.permute.xlu0 %583
  %v586 = vadd.f32 %v576, %v584
  %v587 = vtanh.pop %v586
  %589 = vrot.lane.b32.xlu0 %v587, 64
  %v590 = vpop.permute.xlu0 %589
  %v592 = vmul.f32 %v574, %v590
  %s593 = scalar_lea.vmem %s0, 7
  %v594 = vld [vmem:[%s593] sm:$0x1]
  %v595 = vpack.c.bf16 %v592, %v592
  %597 = vrot.lane.b32.xlu0 %v595, 64
  %v598 = vpop.permute.xlu0 %597
  %v601 = vsel %vm44, %v594, %v598
  %v602 = vsel %vm72, %v601, 0
  %604 = vmatprep.subr.bf16.mxu0 0
  %605 = vmatpush1.bf16.msra.mxu0 %v64
  %606 = vmatprep.subr.bf16.mxu0 0
  %607 = vmatpush1.bf16.msra.mxu0 %v65
  %608 = vmatprep.subr.bf16.mxu0 0
  %609 = vmatpush1.bf16.msra.mxu0 %v66
  %610 = vmatprep.subr.bf16.mxu0 0
  %611 = vmatpush1.bf16.msra.mxu0 %v67
  %612 = vmatprep.subr.bf16.mxu0 0
  %613 = vmatpush1.bf16.msra.mxu0 0
  %614 = vmatprep.subr.bf16.mxu0 0
  %615 = vmatpush1.bf16.msra.mxu0 0
  %616 = vmatprep.subr.bf16.mxu0 0
  %617 = vmatpush1.bf16.msra.mxu0 0
  %618 = vmatprep.subr.bf16.mxu0 0
  %619 = vmatpush1.bf16.msra.mxu0 0
  %620 = vmatprep.subr.bf16.mxu0 0
  %621 = vmatpush1.bf16.msra.mxu0 0
  %622 = vmatprep.subr.bf16.mxu0 0
  %623 = vmatpush1.bf16.msra.mxu0 0
  %624 = vmatprep.subr.bf16.mxu0 0
  %625 = vmatpush1.bf16.msra.mxu0 0
  %626 = vmatprep.subr.bf16.mxu0 0
  %627 = vmatpush1.bf16.msra.mxu0 0
  %628 = vmatprep.subr.bf16.mxu0 0
  %629 = vmatpush1.bf16.msra.mxu0 0
  %630 = vmatprep.subr.bf16.mxu0 0
  %631 = vmatpush1.bf16.msra.mxu0 0
  %632 = vmatprep.subr.bf16.mxu0 0
  %633 = vmatpush1.bf16.msra.mxu0 0
  %634 = vmatprep.subr.bf16.mxu0 0
  %635 = vmatpush1.bf16.msra.mxu0 0
  %636 = vmatprep.mubr.bf16.mxu0 0
  %637 = vmatmul.mubr.bf16.gmra.mrb[0].mxu0 %v602
  %v638 = vpop.f32.mrb[0].mxu0
  %v639 = vadd.f32 %v35, %v638
  %v640 = vpop.f32.mrb[0].mxu0
  %v641 = vpop.f32.mrb[0].mxu0
  %v642 = vpop.f32.mrb[0].mxu0
  %643 = vdwg.mxu0
  %v644 = vxor.u32 %v639, 2147483648
  %v645 = vmul.f32 %v644, 1.442695
  %v646 = vpow.pop %v645
  %v647 = vadd.f32 %v646, 1.0
  %v648 = vrcp.pop %v647
  %v649 = vmul.f32 1.0, %v648
  %v650 = vtanh.pop %v639
  %v651 = vmul.f32 %v649, %v586
  %653 = vrot.lane.b32.xlu0 %v650, 64
  %v654 = vpop.permute.xlu0 %653
  %v656 = vmul.f32 %v649, %v654
  %658 = vrot.lane.b32.xlu0 %v656, 32
  %v659 = vpop.permute.xlu0 %658
  %v661 = vadd.f32 %v651, %v659
  %v662 = vtanh.pop %v661
  %664 = vrot.lane.b32.xlu0 %v662, 64
  %v665 = vpop.permute.xlu0 %664
  %v667 = vmul.f32 %v649, %v665
  %669 = vrot.lane.b32.xlu0 %v667, 32
  %v670 = vpop.permute.xlu0 %669
  %vm672 = vcmask 254976
  %673 = vst.msk [vmem:[#allocation2] sm:$0x3] %vm672, %v670
  %675 = vrot.lane.b32.xlu0 %v661, 96
  %v676 = vpop.permute.xlu0 %675
  %678 = vst.msk [vmem:[#allocation3] sm:$0x3] %vm672, %v676
  // Predicated region
  $region18: #{basic_lstm_forward.1} parent=0 // pred_check
    %p679 = pneg %p15
  $region19: #{basic_lstm_forward.1} parent=0 // pred_check_branch
    %681 = sbr.rel (%p679) target = $region21
  $region20: #{basic_lstm_forward.1} parent=0 // pred_region
    %682 = vst.msk [vmem:[%s3] sm:$0x3] %vm672, %v670
  $region21: #{basic_lstm_forward.1} parent=0 // pred_fallthru
    _
  // Predicated region
  $region22: #{basic_lstm_forward.1} parent=0 // pred_check
    _
  $region23: #{basic_lstm_forward.1} parent=0 // pred_check_branch
    %684 = sbr.rel (0) target = $region25
  $region24: #{basic_lstm_forward.1} parent=0 // pred_region
    _
  $region25: #{basic_lstm_forward.1} parent=0 // pred_fallthru
    _
  // Predicated region
  $region26: #{basic_lstm_forward.1} parent=0 // pred_check
    _
  $region27: #{basic_lstm_forward.1} parent=0 // pred_check_branch
    %686 = sbr.rel (0) target = $region29
  $region28: #{basic_lstm_forward.1} parent=0 // pred_region
    _
  $region29: #{basic_lstm_forward.1} parent=0 // pred_fallthru
    _

</llo_original>
